<compile_context>
chip_gen: v7x
topology: tpu7x:2x2x1
jax: 0.10.0
libtpu: 0.0.40
codegen_flags: <defaults>
</compile_context>

<pallas_src>
from functools import partial

import jax
import jax.numpy as jnp
from jax.experimental import pallas as pl
from jax.experimental.pallas import tpu as pltpu


def _aac_policy_kernel(x_ref, w1_ref, b1_ref, wh_ref, bh_ref, out_ref):
    # Shared layer: Linear + ReLU. MXU matmul with f32 accumulation, VPU epilogue.
    h = jnp.dot(x_ref[...], w1_ref[...], preferred_element_type=jnp.float32)
    h = jnp.maximum(h + b1_ref[...], 0.0)                       # (tile, H_pad) f32

    # Fused heads: ONE lane-dense matmul -> [action_scores | state_value | 0-pad].
    out = jnp.dot(h.astype(wh_ref.dtype), wh_ref[...],
                  preferred_element_type=jnp.float32)
    out_ref[...] = out + bh_ref[...]                            # (tile, 128) f32


def _round_up(v, m):
    return ((v + m - 1) // m) * m


def _pad2d(a, rows, cols):
    return jnp.pad(a, ((0, rows - a.shape[0]), (0, cols - a.shape[1])))


def pack_params(params, compute_dtype=jnp.float32):
    """One-time host-side packing (outside the hot path).

    Fuses the action/state heads into a single (H, A+1) weight and pads the hidden
    and head dims to 128 lanes. Zero padding keeps the math exact: padded hidden
    units have zero weights/bias, so ReLU(0)=0 and they contribute nothing to the
    fused head matmul; padded head lanes are sliced off in the wrapper.
    Biases stay f32 (added post-matmul in f32); weights use `compute_dtype`
    (bf16 halves DMA on v6e/v7x, f32 preserves 1e-5 accuracy).
    """
    a_dim = params["wa"].shape[1]
    h_dim = params["w1"].shape[1]
    h_pad = _round_up(h_dim, 128)
    head_pad = _round_up(a_dim + 1, 128)

    w1 = _pad2d(params["w1"], params["w1"].shape[0], h_pad).astype(compute_dtype)
    b1 = _pad2d(params["b1"], 1, h_pad)                                   # f32
    wh = _pad2d(jnp.concatenate([params["wa"], params["ws"]], axis=1),
                h_pad, head_pad).astype(compute_dtype)                    # (H_pad, 128)
    bh = _pad2d(jnp.concatenate([params["ba"], params["bs"]], axis=1),
                1, head_pad)                                              # f32
    return dict(w1=w1, b1=b1, wh=wh, bh=bh), a_dim


@partial(jax.jit, static_argnames=("a_dim", "tile_n"))
def aac_policy_forward(x, packed, *, a_dim, tile_n=2048):
    """AACPolicyNet forward in a single batch-tiled Pallas kernel.

    x:      (N, in_features) float32
    packed: output of pack_params()
    returns (action_scores (N, A), state_values (N, 1)) float32
    """
    n, o = x.shape
    w1, b1, wh, bh = packed["w1"], packed["b1"], packed["wh"], packed["bh"]
    h_pad, head_pad = w1.shape[1], wh.shape[1]

    # Match x to the weight compute dtype (no-op for f32; bf16 halves the x stream).
    x = x.astype(w1.dtype)

    # Batch tiling: row tiles are multiples of 8 sublanes, up to tile_n rows. Keep
    # >= 2 grid steps when the batch is big enough so the "parallel" axis shards
    # across both TensorCores on v7x. Ragged tails use a non-divisible grid: the
    # out-of-range output rows are masked on store and never read back.
    half = _round_up(pl.cdiv(_round_up(n, 8), 2), 8)
    tile = max(8, min(tile_n, half))
    grid_n = pl.cdiv(n, tile)

    itemsize = jnp.dtype(w1.dtype).itemsize
    flops = 2 * n * (o * h_pad + h_pad * head_pad)
    bytes_accessed = ((x.size + w1.size + wh.size) * itemsize
                      + (b1.size + bh.size) * 4
                      + n * head_pad * 4)

    out = pl.pallas_call(
        _aac_policy_kernel,
        out_shape=jax.ShapeDtypeStruct((n, head_pad), jnp.float32),
        grid=(grid_n,),
        in_specs=[
            pl.BlockSpec((tile, o), lambda i: (i, 0)),          # x: unpadded, row-blocked
            pl.BlockSpec((o, h_pad), lambda i: (0, 0)),         # w1: VMEM-resident
            pl.BlockSpec((1, h_pad), lambda i: (0, 0)),         # b1: VMEM-resident
            pl.BlockSpec((h_pad, head_pad), lambda i: (0, 0)),  # fused head W: resident
            pl.BlockSpec((1, head_pad), lambda i: (0, 0)),      # fused head b: resident
        ],
        out_specs=pl.BlockSpec((tile, head_pad), lambda i: (i, 0)),
        compiler_params=pltpu.CompilerParams(
            dimension_semantics=("parallel",)),
        cost_estimate=pl.CostEstimate(
            flops=flops, transcendentals=0, bytes_accessed=bytes_accessed),
    )(x, w1, b1, wh, bh)

    action_scores = out[:, :a_dim]
    state_values = out[:, a_dim:a_dim + 1]
    return action_scores, state_values


def init_params(key, in_features, hidden_dim, out_actions):
    """Deterministic synthetic parameter init (PyTorch-like uniform fan-in)."""
    k1, k2, k3, k4, k5, k6 = jax.random.split(key, 6)

    def lin(kw, kb, fan_in, fan_out):
        bound = 1.0 / jnp.sqrt(fan_in)
        w = jax.random.uniform(kw, (fan_in, fan_out), jnp.float32, -bound, bound)
        b = jax.random.uniform(kb, (1, fan_out), jnp.float32, -bound, bound)
        return w, b

    w1, b1 = lin(k1, k2, in_features, hidden_dim)
    wa, ba = lin(k3, k4, hidden_dim, out_actions)
    ws, bs = lin(k5, k6, hidden_dim, 1)
    return dict(w1=w1, b1=b1, wa=wa, ba=ba, ws=ws, bs=bs)


def reference_forward(x, p):
    h = jnp.maximum(x @ p["w1"] + p["b1"], 0.0)
    return h @ p["wa"] + p["ba"], h @ p["ws"] + p["bs"]


if __name__ == "__main__":
    # Small shapes consistent with the module's forward: x is (N, in_features).
    N, IN_FEATURES, HIDDEN_DIM, OUT_ACTIONS = 8, 16, 32, 4

    key = jax.random.PRNGKey(0)
    kx, kp = jax.random.split(key)
    x = jax.random.normal(kx, (N, IN_FEATURES), dtype=jnp.float32)
    params = init_params(kp, IN_FEATURES, HIDDEN_DIM, OUT_ACTIONS)

    # One-time weight packing (f32, exact).
    packed, a_dim = pack_params(params)

    action_scores, state_values = aac_policy_forward(x, packed, a_dim=a_dim)
    jax.block_until_ready((action_scores, state_values))

    # Correctness vs pure-JAX reference.
    ref_a, ref_v = reference_forward(x, params)
    assert action_scores.shape == (N, OUT_ACTIONS)
    assert state_values.shape == (N, 1)
    assert jnp.allclose(action_scores, ref_a, atol=1e-5, rtol=1e-5)
    assert jnp.allclose(state_values, ref_v, atol=1e-5, rtol=1e-5)

    # Batch that exercises a >=2-step (megacore-shardable) grid with a ragged tail.
    N2 = 777
    x2 = jax.random.normal(jax.random.PRNGKey(1), (N2, IN_FEATURES), jnp.float32)
    a2, v2 = aac_policy_forward(x2, packed, a_dim=a_dim)
    jax.block_until_ready((a2, v2))
    ra2, rv2 = reference_forward(x2, params)
    assert jnp.allclose(a2, ra2, atol=1e-5, rtol=1e-5)
    assert jnp.allclose(v2, rv2, atol=1e-5, rtol=1e-5)

    # Optional bf16-input path (bandwidth win on v6e/v7x): f32 accumulation, loose
    # sanity tolerance since inputs/weights are rounded to bf16.
    packed_bf16, _ = pack_params(params, compute_dtype=jnp.bfloat16)
    ab, vb = aac_policy_forward(x, packed_bf16, a_dim=a_dim)
    jax.block_until_ready((ab, vb))
    assert jnp.allclose(ab, ref_a, atol=1e-1)
    assert jnp.allclose(vb, ref_v, atol=1e-1)

    print("KERNEL_OK")
</pallas_src>

<mosaic_0001>
module attributes {stable_mosaic.version = 11 : i64} {
  func.func @_aac_policy_kernel(%arg0: i32, %arg1: memref<8x16xf32, #tpu.memory_space<vmem>>, %arg2: memref<16x128xf32, #tpu.memory_space<vmem>>, %arg3: memref<1x128xf32, #tpu.memory_space<vmem>>, %arg4: memref<128x128xf32, #tpu.memory_space<vmem>>, %arg5: memref<1x128xf32, #tpu.memory_space<vmem>>, %arg6: memref<8x128xf32, #tpu.memory_space<vmem>>) attributes {dimension_semantics = [#tpu.dimension_semantics<parallel>], iteration_bounds = array<i64: 1>, scalar_prefetch = 0 : i64, scratch_operands = 0 : i64, tpu.core_type = #tpu.core_type<tc>, window_params = [{transform_indices = @transform_0, window_bounds = array<i64: 8, 16>}, {pipeline_mode = #tpu.pipeline_mode<synchronous>, transform_indices = @transform_1, window_bounds = array<i64: 16, 128>}, {pipeline_mode = #tpu.pipeline_mode<synchronous>, transform_indices = @transform_2, window_bounds = array<i64: 1, 128>}, {pipeline_mode = #tpu.pipeline_mode<synchronous>, transform_indices = @transform_3, window_bounds = array<i64: 128, 128>}, {pipeline_mode = #tpu.pipeline_mode<synchronous>, transform_indices = @transform_4, window_bounds = array<i64: 1, 128>}, {transform_indices = @transform_5, window_bounds = array<i64: 8, 128>}]} {
    %c0 = arith.constant 0 : index
    %c0_0 = arith.constant 0 : index
    %0 = vector.load %arg1[%c0, %c0_0] : memref<8x16xf32, #tpu.memory_space<vmem>>, vector<8x16xf32>
    %c0_1 = arith.constant 0 : index
    %c0_2 = arith.constant 0 : index
    %1 = vector.load %arg2[%c0_1, %c0_2] : memref<16x128xf32, #tpu.memory_space<vmem>>, vector<16x128xf32>
    %cst = arith.constant dense<0.000000e+00> : vector<8x128xf32>
    %2 = tpu.matmul %0, %1, %cst {dimension_numbers = #tpu.dot_dimension_numbers<[1], [0], [0], [1], [0, 0, 1, 1], [], []>} : vector<8x16xf32>, vector<16x128xf32>, vector<8x128xf32> -> vector<8x128xf32>
    %c0_3 = arith.constant 0 : index
    %c0_4 = arith.constant 0 : index
    %3 = vector.load %arg3[%c0_3, %c0_4] : memref<1x128xf32, #tpu.memory_space<vmem>>, vector<1x128xf32>
    %4 = vector.broadcast %3 : vector<1x128xf32> to vector<8x128xf32>
    %5 = arith.addf %2, %4 : vector<8x128xf32>
    %cst_5 = arith.constant 0.000000e+00 : f32
    %6 = vector.broadcast %cst_5 : f32 to vector<8x128xf32>
    %7 = arith.maximumf %5, %6 : vector<8x128xf32>
    %c0_6 = arith.constant 0 : index
    %c0_7 = arith.constant 0 : index
    %8 = vector.load %arg4[%c0_6, %c0_7] : memref<128x128xf32, #tpu.memory_space<vmem>>, vector<128x128xf32>
    %cst_8 = arith.constant dense<0.000000e+00> : vector<8x128xf32>
    %9 = tpu.matmul %7, %8, %cst_8 {dimension_numbers = #tpu.dot_dimension_numbers<[1], [0], [0], [1], [0, 0, 1, 1], [], []>} : vector<8x128xf32>, vector<128x128xf32>, vector<8x128xf32> -> vector<8x128xf32>
    %c0_9 = arith.constant 0 : index
    %c0_10 = arith.constant 0 : index
    %10 = vector.load %arg5[%c0_9, %c0_10] : memref<1x128xf32, #tpu.memory_space<vmem>>, vector<1x128xf32>
    %11 = vector.broadcast %10 : vector<1x128xf32> to vector<8x128xf32>
    %12 = arith.addf %9, %11 : vector<8x128xf32>
    %c0_11 = arith.constant 0 : index
    %c0_12 = arith.constant 0 : index
    %13 = vector.load %arg6[%c0_11, %c0_12] : memref<8x128xf32, #tpu.memory_space<vmem>>, vector<8x128xf32>
    tpu.vector_store %arg6[%c0_11, %c0_12], %12 {strides = array<i32>} : memref<8x128xf32, #tpu.memory_space<vmem>>, vector<8x128xf32>,
    return
  }
  func.func @transform_0(%arg0: i32) -> (i32, i32) {
    %c0_i32 = arith.constant 0 : i32
    %c0_i32_0 = arith.constant 0 : i32
    return %arg0, %c0_i32 : i32, i32
  }
  func.func @transform_1(%arg0: i32) -> (i32, i32) {
    %c0_i32 = arith.constant 0 : i32
    %c0_i32_0 = arith.constant 0 : i32
    %c0_i32_1 = arith.constant 0 : i32
    return %c0_i32, %c0_i32_0 : i32, i32
  }
  func.func @transform_2(%arg0: i32) -> (i32, i32) {
    %c0_i32 = arith.constant 0 : i32
    %c0_i32_0 = arith.constant 0 : i32
    %c0_i32_1 = arith.constant 0 : i32
    return %c0_i32, %c0_i32_0 : i32, i32
  }
  func.func @transform_3(%arg0: i32) -> (i32, i32) {
    %c0_i32 = arith.constant 0 : i32
    %c0_i32_0 = arith.constant 0 : i32
    %c0_i32_1 = arith.constant 0 : i32
    return %c0_i32, %c0_i32_0 : i32, i32
  }
  func.func @transform_4(%arg0: i32) -> (i32, i32) {
    %c0_i32 = arith.constant 0 : i32
    %c0_i32_0 = arith.constant 0 : i32
    %c0_i32_1 = arith.constant 0 : i32
    return %c0_i32, %c0_i32_0 : i32, i32
  }
  func.func @transform_5(%arg0: i32) -> (i32, i32) {
    %c0_i32 = arith.constant 0 : i32
    %c0_i32_0 = arith.constant 0 : i32
    return %arg0, %c0_i32 : i32, i32
  }
}

</mosaic_0001>

<llo_original>
// kernel: aac_policy_forward.1
$region0: #{aac_policy_forward.1}
  #allocation0 [shape = 'u32[]', space=smem, size = 0x4, offset = 0x4, fixed_abs, tag = 'smem constant byte address 0x4 - core index']
  #allocation1 [shape = 'u32[144,128]{1,0:T(1,128)}', space=vmem, size = 0x12000, scoped, tag = 'internal scratch']
  %s0 = inlined_call_operand.hbm [shape: f32[8,16], index: 0, kind: input, shape index: {}]
  %s1 = inlined_call_operand.hbm [shape: f32[16,128], index: 1, kind: input, shape index: {}]
  %s2 = inlined_call_operand.vmem [shape: f32[1,128], index: 2, kind: input, shape index: {}]
  %s3 = inlined_call_operand.hbm [shape: f32[128,128], index: 3, kind: input, shape index: {}]
  %s4 = inlined_call_operand.vmem [shape: f32[1,128], index: 4, kind: input, shape index: {}]
  %s5 = inlined_call_operand.vmem [shape: f32[8,128], index: 5, kind: output, shape index: {}]
  %s6 = sld [smem:[#allocation0]]
  $region42: #{aac_policy_forward.1} parent=0
    _
  %s8 = ssub.s32 1, %s6
  %s9 = scalar_select 0, %s8, %s6
  $region1: #{aac_policy_forward.1} parent=0
    #allocation2 [shape = 'u8[4096]{0}', space=vmem, size = 0x1000, scoped, tag = 'input window, operand 0, single buffered']
    #allocation3 [shape = 's32[1]{0}', space=sflag, size = 0x4, scoped, tag = 'scoped memory for aac_policy_forward.1']
    #allocation4 [shape = 'u8[8192]{0}', space=vmem, size = 0x2000, scoped, tag = 'input window, operand 1, single buffered']
    #allocation5 [shape = 's32[1]{0}', space=sflag, size = 0x4, scoped, tag = 'scoped memory for aac_policy_forward.1']
    #allocation6 [shape = 'u8[65536]{0}', space=vmem, size = 0x10000, scoped, tag = 'input window, operand 3, single buffered']
    %10 = vsyncpa [#allocation3], 0
    %11 = vsyncpa [#allocation5], 0
    // Predicated region
    $region2: #{aac_policy_forward.1} parent=1 // pred_check
      _
    $region3: #{aac_policy_forward.1} parent=1 // pred_check_branch
      %13 = sbr.rel (0) target = $region5
    $region4: #{aac_policy_forward.1} parent=1 // pred_region
      %s15 = ssub.s32 128, 128
      %16 = vsyncadd [#allocation3], %s15
      %s18 = sshll.u32 [#allocation2], 4
      %s19 = int_to_ptr.vmem [resolvable:$true] %s18
      %21 = dma.hbm_to_vmem [thread:$0]  %s0, 128, %s19, [#allocation3]
    $region5: #{aac_policy_forward.1} parent=1 // pred_fallthru
      _
    // Predicated region
    $region6: #{aac_policy_forward.1} parent=1 // pred_check
      _
    $region7: #{aac_policy_forward.1} parent=1 // pred_check_branch
      %23 = sbr.rel (0) target = $region9
    $region8: #{aac_policy_forward.1} parent=1 // pred_region
      %s25 = ssub.s32 256, 256
      %26 = vsyncadd [#allocation5], %s25
      %s27 = sshll.u32 [#allocation4], 4
      %s28 = int_to_ptr.vmem [resolvable:$true] %s27
      %33 = dma.hbm_to_vmem [thread:$0]  %s1, 256, %s28, [#allocation5], 128, 128, 8
    $region9: #{aac_policy_forward.1} parent=1 // pred_fallthru
      _
    // Predicated region
    $region10: #{aac_policy_forward.1} parent=1 // pred_check
      _
    $region11: #{aac_policy_forward.1} parent=1 // pred_check_branch
      %35 = sbr.rel (0) target = $region13
    $region12: #{aac_policy_forward.1} parent=1 // pred_region
      _
    $region13: #{aac_policy_forward.1} parent=1 // pred_fallthru
      _
    // Predicated region
    $region14: #{aac_policy_forward.1} parent=1 // pred_check
      _
    $region15: #{aac_policy_forward.1} parent=1 // pred_check_branch
      %37 = sbr.rel (0) target = $region17
    $region16: #{aac_policy_forward.1} parent=1 // pred_region
      %s39 = ssub.s32 2048, 2048
      %40 = vsyncadd [#allocation5], %s39
      %s41 = sshll.u32 [#allocation6], 4
      %s42 = int_to_ptr.vmem [resolvable:$true] %s41
      %47 = dma.hbm_to_vmem [thread:$0]  %s3, 2048, %s42, [#allocation5], 128, 128, 8
    $region17: #{aac_policy_forward.1} parent=1 // pred_fallthru
      _
    // Predicated region
    $region18: #{aac_policy_forward.1} parent=1 // pred_check
      _
    $region19: #{aac_policy_forward.1} parent=1 // pred_check_branch
      %49 = sbr.rel (0) target = $region21
    $region20: #{aac_policy_forward.1} parent=1 // pred_region
      _
    $region21: #{aac_policy_forward.1} parent=1 // pred_fallthru
      _
    // Predicated region
    $region22: #{aac_policy_forward.1} parent=1 // pred_check
      _
    $region23: #{aac_policy_forward.1} parent=1 // pred_check_branch
      %51 = sbr.rel (0) target = $region25
    $region24: #{aac_policy_forward.1} parent=1 // pred_region
      %52 = dma.done [#allocation3], 128
    $region25: #{aac_policy_forward.1} parent=1 // pred_fallthru
      _
    // Predicated region
    $region26: #{aac_policy_forward.1} parent=1 // pred_check
      _
    $region27: #{aac_policy_forward.1} parent=1 // pred_check_branch
      %54 = sbr.rel (0) target = $region29
    $region28: #{aac_policy_forward.1} parent=1 // pred_region
      %55 = dma.done [#allocation5], 256
    $region29: #{aac_policy_forward.1} parent=1 // pred_fallthru
      _
    // Predicated region
    $region30: #{aac_policy_forward.1} parent=1 // pred_check
      _
    $region31: #{aac_policy_forward.1} parent=1 // pred_check_branch
      %57 = sbr.rel (0) target = $region33
    $region32: #{aac_policy_forward.1} parent=1 // pred_region
      %58 = dma.done [#allocation5], 2048
    $region33: #{aac_policy_forward.1} parent=1 // pred_fallthru
      _
    %v59 = vld [vmem:[#allocation2] sm:$0xff]
    %v60 = vld [vmem:[#allocation4] sm:$0xff]
    %v61 = vld [vmem:[#allocation4 + $0x8] sm:$0xff]
    %v62 = vld [vmem:[%s2] sm:$0x1]
    %v64 = vlaneseq
    %v65 = vshrl.u32 %v64, 7
    %v66 = vsub.s32 0, %v65
    %v67 = vrot.slane %v62, %v66
    %vm69 = vcmask 130048
    %v71 = vsel %vm69, %v59, 0
    %73 = vmatprep.subr.mxu0 0.0
    %74 = vmatpush1.msra.mxu0 %v60
    %75 = vmatprep.subr.mxu0 0.0
    %76 = vmatpush1.msra.mxu0 %v61
    %77 = vmatprep.subr.mxu0 0.0
    %78 = vmatpush1.msra.mxu0 0.0
    %79 = vmatprep.subr.mxu0 0.0
    %80 = vmatpush1.msra.mxu0 0.0
    %81 = vmatprep.subr.mxu0 0.0
    %82 = vmatpush1.msra.mxu0 0.0
    %83 = vmatprep.subr.mxu0 0.0
    %84 = vmatpush1.msra.mxu0 0.0
    %85 = vmatprep.subr.mxu0 0.0
    %86 = vmatpush1.msra.mxu0 0.0
    %87 = vmatprep.subr.mxu0 0.0
    %88 = vmatpush1.msra.mxu0 0.0
    %89 = vmatprep.subr.mxu0 0.0
    %90 = vmatpush1.msra.mxu0 0.0
    %91 = vmatprep.subr.mxu0 0.0
    %92 = vmatpush1.msra.mxu0 0.0
    %93 = vmatprep.subr.mxu0 0.0
    %94 = vmatpush1.msra.mxu0 0.0
    %95 = vmatprep.subr.mxu0 0.0
    %96 = vmatpush1.msra.mxu0 0.0
    %97 = vmatprep.subr.mxu0 0.0
    %98 = vmatpush1.msra.mxu0 0.0
    %99 = vmatprep.subr.mxu0 0.0
    %100 = vmatpush1.msra.mxu0 0.0
    %101 = vmatprep.subr.mxu0 0.0
    %102 = vmatpush1.msra.mxu0 0.0
    %103 = vmatprep.subr.mxu0 0.0
    %104 = vmatpush1.msra.mxu0 0.0
    %105 = vmatprep.subr.mxu0 0.0
    %106 = vmatpush1.msra.mxu0 0.0
    %107 = vmatprep.subr.mxu0 0.0
    %108 = vmatpush1.msra.mxu0 0.0
    %109 = vmatprep.subr.mxu0 0.0
    %110 = vmatpush1.msra.mxu0 0.0
    %111 = vmatprep.subr.mxu0 0.0
    %112 = vmatpush1.msra.mxu0 0.0
    %113 = vmatprep.subr.mxu0 0.0
    %114 = vmatpush1.msra.mxu0 0.0
    %115 = vmatprep.subr.mxu0 0.0
    %116 = vmatpush1.msra.mxu0 0.0
    %117 = vmatprep.subr.mxu0 0.0
    %118 = vmatpush1.msra.mxu0 0.0
    %119 = vmatprep.subr.mxu0 0.0
    %120 = vmatpush1.msra.mxu0 0.0
    %121 = vmatprep.subr.mxu0 0.0
    %122 = vmatpush1.msra.mxu0 0.0
    %123 = vmatprep.subr.mxu0 0.0
    %124 = vmatpush1.msra.mxu0 0.0
    %125 = vmatprep.subr.mxu0 0.0
    %126 = vmatpush1.msra.mxu0 0.0
    %127 = vmatprep.subr.mxu0 0.0
    %128 = vmatpush1.msra.mxu0 0.0
    %129 = vmatprep.subr.mxu0 0.0
    %130 = vmatpush1.msra.mxu0 0.0
    %131 = vmatprep.subr.mxu0 0.0
    %132 = vmatpush1.msra.mxu0 0.0
    %133 = vmatprep.subr.mxu0 0.0
    %134 = vmatpush1.msra.mxu0 0.0
    %135 = vmatprep.subr.mxu0 0.0
    %136 = vmatpush1.msra.mxu0 0.0
    %137 = vmatprep.mubr.f32.mxu0 0.0
    %138 = vmatmul.mubr.f32.gmra.mrb[0].mxu0 %v71
    %v139 = vpop.f32.mrb[0].mxu0
    %v140 = vadd.f32 %v67, %v139
    %v141 = vpop.f32.mrb[0].mxu0
    %142 = vdwg.mxu0
    %v143 = vmax.f32 %v140, 0.0
    %v144 = vld [vmem:[#allocation6] sm:$0xff]
    %v145 = vld [vmem:[#allocation6 + $0x8] sm:$0xff]
    %v146 = vld [vmem:[#allocation6 + $0x10] sm:$0xff]
    %v147 = vld [vmem:[#allocation6 + $0x18] sm:$0xff]
    %v148 = vld [vmem:[#allocation6 + $0x20] sm:$0xff]
    %v149 = vld [vmem:[#allocation6 + $0x28] sm:$0xff]
    %v150 = vld [vmem:[#allocation6 + $0x30] sm:$0xff]
    %v151 = vld [vmem:[#allocation6 + $0x38] sm:$0xff]
    %v152 = vld [vmem:[#allocation6 + $0x40] sm:$0xff]
    %v153 = vld [vmem:[#allocation6 + $0x48] sm:$0xff]
    %v154 = vld [vmem:[#allocation6 + $0x50] sm:$0xff]
    %v155 = vld [vmem:[#allocation6 + $0x58] sm:$0xff]
    %v156 = vld [vmem:[#allocation6 + $0x60] sm:$0xff]
    %v157 = vld [vmem:[#allocation6 + $0x68] sm:$0xff]
    %v158 = vld [vmem:[#allocation6 + $0x70] sm:$0xff]
    %v159 = vld [vmem:[#allocation6 + $0x78] sm:$0xff]
    %v160 = vld [vmem:[%s4] sm:$0x1]
    %v162 = vlaneseq
    %v163 = vshrl.u32 %v162, 7
    %v164 = vsub.s32 0, %v163
    %v165 = vrot.slane %v160, %v164
    %167 = vmatprep.subr.mxu0 0.0
    %168 = vmatpush1.msra.mxu0 %v144
    %169 = vmatprep.subr.mxu0 0.0
    %170 = vmatpush1.msra.mxu0 %v145
    %171 = vmatprep.subr.mxu0 0.0
    %172 = vmatpush1.msra.mxu0 %v146
    %173 = vmatprep.subr.mxu0 0.0
    %174 = vmatpush1.msra.mxu0 %v147
    %175 = vmatprep.subr.mxu0 0.0
    %176 = vmatpush1.msra.mxu0 %v148
    %177 = vmatprep.subr.mxu0 0.0
    %178 = vmatpush1.msra.mxu0 %v149
    %179 = vmatprep.subr.mxu0 0.0
    %180 = vmatpush1.msra.mxu0 %v150
    %181 = vmatprep.subr.mxu0 0.0
    %182 = vmatpush1.msra.mxu0 %v151
    %183 = vmatprep.subr.mxu0 0.0
    %184 = vmatpush1.msra.mxu0 %v152
    %185 = vmatprep.subr.mxu0 0.0
    %186 = vmatpush1.msra.mxu0 %v153
    %187 = vmatprep.subr.mxu0 0.0
    %188 = vmatpush1.msra.mxu0 %v154
    %189 = vmatprep.subr.mxu0 0.0
    %190 = vmatpush1.msra.mxu0 %v155
    %191 = vmatprep.subr.mxu0 0.0
    %192 = vmatpush1.msra.mxu0 %v156
    %193 = vmatprep.subr.mxu0 0.0
    %194 = vmatpush1.msra.mxu0 %v157
    %195 = vmatprep.subr.mxu0 0.0
    %196 = vmatpush1.msra.mxu0 %v158
    %197 = vmatprep.subr.mxu0 0.0
    %198 = vmatpush1.msra.mxu0 %v159
    %199 = vmatprep.subr.mxu0 0.0
    %200 = vmatpush1.msra.mxu0 0.0
    %201 = vmatprep.subr.mxu0 0.0
    %202 = vmatpush1.msra.mxu0 0.0
    %203 = vmatprep.subr.mxu0 0.0
    %204 = vmatpush1.msra.mxu0 0.0
    %205 = vmatprep.subr.mxu0 0.0
    %206 = vmatpush1.msra.mxu0 0.0
    %207 = vmatprep.subr.mxu0 0.0
    %208 = vmatpush1.msra.mxu0 0.0
    %209 = vmatprep.subr.mxu0 0.0
    %210 = vmatpush1.msra.mxu0 0.0
    %211 = vmatprep.subr.mxu0 0.0
    %212 = vmatpush1.msra.mxu0 0.0
    %213 = vmatprep.subr.mxu0 0.0
    %214 = vmatpush1.msra.mxu0 0.0
    %215 = vmatprep.subr.mxu0 0.0
    %216 = vmatpush1.msra.mxu0 0.0
    %217 = vmatprep.subr.mxu0 0.0
    %218 = vmatpush1.msra.mxu0 0.0
    %219 = vmatprep.subr.mxu0 0.0
    %220 = vmatpush1.msra.mxu0 0.0
    %221 = vmatprep.subr.mxu0 0.0
    %222 = vmatpush1.msra.mxu0 0.0
    %223 = vmatprep.subr.mxu0 0.0
    %224 = vmatpush1.msra.mxu0 0.0
    %225 = vmatprep.subr.mxu0 0.0
    %226 = vmatpush1.msra.mxu0 0.0
    %227 = vmatprep.subr.mxu0 0.0
    %228 = vmatpush1.msra.mxu0 0.0
    %229 = vmatprep.subr.mxu0 0.0
    %230 = vmatpush1.msra.mxu0 0.0
    %231 = vmatprep.mubr.f32.mxu0 0.0
    %232 = vmatmul.mubr.f32.gmra.mrb[0].mxu0 %v143
    %v233 = vpop.f32.mrb[0].mxu0
    %v234 = vadd.f32 %v165, %v233
    %v235 = vpop.f32.mrb[0].mxu0
    %236 = vdwg.mxu0
    %237 = vst [vmem:[%s5] sm:$0xff] %v234
    // Predicated region
    $region34: #{aac_policy_forward.1} parent=1 // pred_check
      _
    $region35: #{aac_policy_forward.1} parent=1 // pred_check_branch
      %239 = sbr.rel (0) target = $region37
    $region36: #{aac_policy_forward.1} parent=1 // pred_region
      _
    $region37: #{aac_policy_forward.1} parent=1 // pred_fallthru
      _
    // Predicated region
    $region38: #{aac_policy_forward.1} parent=1 // pred_check
      _
    $region39: #{aac_policy_forward.1} parent=1 // pred_check_branch
      %241 = sbr.rel (0) target = $region41
    $region40: #{aac_policy_forward.1} parent=1 // pred_region
      _
    $region41: #{aac_policy_forward.1} parent=1 // pred_fallthru
      _
    %242 = vsyncpa [#allocation3], 1
    %243 = vsyncpa [#allocation5], 1

</llo_original>
